<compile_context>
chip_gen: v7x
topology: tpu7x:2x2x1
jax: 0.10.0
libtpu: 0.0.40
codegen_flags: <defaults>
</compile_context>

<pallas_src>
import functools

import jax
import jax.numpy as jnp
from jax.experimental import pallas as pl
from jax.experimental.pallas import tpu as pltpu

_VMEM_LIMIT = 32 * 1024 * 1024   # raise v5e's 16 MiB default scoped-VMEM limit; safe on all gens
_MAX_ROW_TILE = 256              # adj row-tile cap: bounds VMEM footprint at large N


def _pick_row_tile(n):
    """Largest row tile <= _MAX_ROW_TILE that divides n (falls back to full n)."""
    if n <= _MAX_ROW_TILE:
        return n
    t = _MAX_ROW_TILE
    while t >= 8:
        if n % t == 0:
            return t
        t //= 2
    return n


# --------------------------- shared (N, N) adjacency path ---------------------------

def _shared_agg_first_kernel(x_fold_ref, w_ref, adj_ref, out_ref, *, B, C_in):
    # order: (adj @ x) @ W   (used when C_in <= C_out)
    adj = adj_ref[...]                                    # (TR, N)
    x_fold = x_fold_ref[...]                              # (N, B*C_in)
    w = w_ref[...]                                        # (C_in, C_out)
    agg = jnp.dot(adj, x_fold, preferred_element_type=jnp.float32)   # (TR, B*C_in)
    outs = []
    for b in range(B):                                    # static unroll over batch
        agg_b = agg[:, b * C_in:(b + 1) * C_in].astype(w.dtype)
        outs.append(jnp.dot(agg_b, w, preferred_element_type=jnp.float32))
    # One dense (TR, B*C_out) store (lane-dense when B*C_out is a multiple of 128).
    out_ref[...] = jnp.concatenate(outs, axis=-1).astype(out_ref.dtype)


def _shared_proj_first_kernel(x_fold_ref, w_ref, adj_ref, out_ref, h_ref, *, B, C_in):
    # order: adj @ (x @ W)   (used when C_out < C_in); projection computed once, reused
    @pl.when(pl.program_id(0) == 0)
    def _():
        x_fold = x_fold_ref[...]                          # (N, B*C_in)
        w = w_ref[...]                                    # (C_in, C_out)
        hs = []
        for b in range(B):
            x_b = x_fold[:, b * C_in:(b + 1) * C_in]
            hs.append(jnp.dot(x_b, w, preferred_element_type=jnp.float32))
        h_ref[...] = jnp.concatenate(hs, axis=-1).astype(h_ref.dtype)

    out = jnp.dot(adj_ref[...], h_ref[...], preferred_element_type=jnp.float32)
    out_ref[...] = out.astype(out_ref.dtype)


def _shared_gcn(x, w_t, adj, mm_dtype, out_dtype):
    B, N, C_in = x.shape
    C_out = w_t.shape[1]
    TR = _pick_row_tile(N)
    R = N // TR

    # Fold batch into lanes: x_fold[n, b*C_in + c] = x[b, n, c]  (wrapper-side layout only).
    x_fold = x.transpose(1, 0, 2).reshape(N, B * C_in).astype(mm_dtype)
    w_t = w_t.astype(mm_dtype)
    adj = adj.astype(mm_dtype)

    project_first = C_out < C_in
    if project_first:
        kernel = functools.partial(_shared_proj_first_kernel, B=B, C_in=C_in)
        scratch = [pltpu.VMEM((N, B * C_out), mm_dtype)]   # projected features, all nodes
        dims = ("arbitrary",)      # scratch carries state across row tiles
    else:
        kernel = functools.partial(_shared_agg_first_kernel, B=B, C_in=C_in)
        scratch = []
        dims = ("parallel",)       # row tiles independent -> both v7x TensorCores busy

    out_fold = pl.pallas_call(
        kernel,
        out_shape=jax.ShapeDtypeStruct((N, B * C_out), out_dtype),
        grid_spec=pltpu.PrefetchScalarGridSpec(
            num_scalar_prefetch=0,
            grid=(R,),
            in_specs=[
                pl.BlockSpec((N, B * C_in), lambda r: (0, 0)),   # x_fold, resident
                pl.BlockSpec((C_in, C_out), lambda r: (0, 0)),   # W, resident
                pl.BlockSpec((TR, N), lambda r: (r, 0)),         # adj row tile
            ],
            out_specs=pl.BlockSpec((TR, B * C_out), lambda r: (r, 0)),
            scratch_shapes=scratch,
        ),
        compiler_params=pltpu.CompilerParams(
            dimension_semantics=dims, vmem_limit_bytes=_VMEM_LIMIT),
    )(x_fold, w_t, adj)

    # Unfold: (N, B*C_out) -> (B, N, C_out).
    return out_fold.reshape(N, B, C_out).transpose(1, 0, 2)


# --------------------------- batched (B, N, N) adjacency path ---------------------------

def _batched_agg_first_kernel(x_ref, w_ref, adj_ref, out_ref):
    # order: (adj[b] @ x[b]) @ W_pad
    w = w_ref[...]                                                        # (C_in, C_pad)
    agg = jnp.dot(adj_ref[0], x_ref[0], preferred_element_type=jnp.float32)   # (TR, C_in)
    out = jnp.dot(agg.astype(w.dtype), w, preferred_element_type=jnp.float32)  # (TR, C_pad)
    out_ref[0] = out.astype(out_ref.dtype)


def _batched_proj_first_kernel(x_ref, w_ref, adj_ref, out_ref, h_ref):
    # order: adj[b] @ (x[b] @ W_pad); projection computed once per batch element (r == 0)
    @pl.when(pl.program_id(1) == 0)
    def _():
        h = jnp.dot(x_ref[0], w_ref[...], preferred_element_type=jnp.float32)  # (N, C_pad)
        h_ref[...] = h.astype(h_ref.dtype)

    out = jnp.dot(adj_ref[0], h_ref[...], preferred_element_type=jnp.float32)
    out_ref[0] = out.astype(out_ref.dtype)


def _batched_gcn(x, w_t, adj, mm_dtype, out_dtype):
    B, N, C_in = x.shape
    C_out = w_t.shape[1]
    TR = _pick_row_tile(N)
    R = N // TR

    # Pad C_out to a multiple of 128 (zero columns) -> lane-dense, unmasked output stores.
    C_pad = -(-C_out // 128) * 128
    if C_pad != C_out:
        w_t = jnp.pad(w_t, ((0, 0), (0, C_pad - C_out)))

    x = x.astype(mm_dtype)
    w_t = w_t.astype(mm_dtype)
    adj = adj.astype(mm_dtype)

    project_first = C_out < C_in
    if project_first:
        kernel = _batched_proj_first_kernel
        scratch = [pltpu.VMEM((N, C_pad), mm_dtype)]
        dims = ("parallel", "arbitrary")      # r carries the scratch; r==0 re-inits per b
    else:
        kernel = _batched_agg_first_kernel
        scratch = []
        dims = ("parallel", "parallel")

    out = pl.pallas_call(
        kernel,
        out_shape=jax.ShapeDtypeStruct((B, N, C_pad), out_dtype),
        grid_spec=pltpu.PrefetchScalarGridSpec(
            num_scalar_prefetch=0,
            grid=(B, R),
            in_specs=[
                pl.BlockSpec((1, N, C_in), lambda b, r: (b, 0, 0)),   # x[b], resident over r
                pl.BlockSpec((C_in, C_pad), lambda b, r: (0, 0)),     # W, resident
                pl.BlockSpec((1, TR, N), lambda b, r: (b, r, 0)),     # adj[b] row tile
            ],
            out_specs=pl.BlockSpec((1, TR, C_pad), lambda b, r: (b, r, 0)),
            scratch_shapes=scratch,
        ),
        compiler_params=pltpu.CompilerParams(
            dimension_semantics=dims, vmem_limit_bytes=_VMEM_LIMIT),
    )(x, w_t, adj)

    return out[..., :C_out]


# ------------------------------------ public wrapper ------------------------------------

def simple_gcn_layer(x, weight, adj, *, compute_dtype=None):
    """SimpleGCNLayer forward.

    x:      (B, N, C_in)
    weight: (C_out, C_in)        -- PyTorch nn.Linear layout, bias=False
    adj:    (N, N) shared or (B, N, N) per-batch
    compute_dtype: optional matmul-operand dtype (e.g. jnp.bfloat16 on v5e/v6e).
                   Accumulation stays f32; output keeps x.dtype.
    """
    out_dtype = x.dtype
    mm_dtype = compute_dtype if compute_dtype is not None else x.dtype
    w_t = weight.T                                # (C_in, C_out), wrapper-side transpose
    if adj.ndim == 2:
        return _shared_gcn(x, w_t, adj, mm_dtype, out_dtype)
    return _batched_gcn(x, w_t, adj, mm_dtype, out_dtype)


# ------------------------------------ reference / test ------------------------------------

def _reference(x, weight, adj):
    """Plain-JAX reference matching the PyTorch forward."""
    h = x @ weight.T                              # Linear, bias=False
    if adj.ndim == 2:
        adj = jnp.broadcast_to(adj[None], (x.shape[0],) + adj.shape)
    return jnp.einsum("bij,bjc->bic", adj, h)     # torch.bmm


def _make_adj(key, shape):
    a = (jax.random.uniform(key, shape) < 0.3).astype(jnp.float32)
    eye = jnp.eye(shape[-1], dtype=jnp.float32)
    a = a + (eye if len(shape) == 2 else eye[None])
    return a / jnp.sum(a, axis=-1, keepdims=True)


if __name__ == "__main__":
    B, N = 2, 16
    key = jax.random.PRNGKey(0)

    # Two channel configs so both matmul orders (agg-first and project-first) run.
    for (C_in, C_out) in [(32, 64), (64, 32)]:
        key, kx, kw, ka2, ka3 = jax.random.split(key, 5)
        x = jax.random.normal(kx, (B, N, C_in), dtype=jnp.float32)
        scale = 1.0 / (C_in ** 0.5)
        weight = jax.random.uniform(kw, (C_out, C_in), jnp.float32, -scale, scale)
        adj2 = _make_adj(ka2, (N, N))          # shared adjacency
        adj3 = _make_adj(ka3, (B, N, N))       # per-batch adjacency

        for adj in (adj2, adj3):
            out = jax.block_until_ready(simple_gcn_layer(x, weight, adj))
            ref = _reference(x, weight, adj)
            assert out.shape == (B, N, C_out), out.shape
            assert jnp.allclose(out, ref, atol=1e-4, rtol=1e-4), (
                f"mismatch: C_in={C_in} C_out={C_out} adj_ndim={adj.ndim}")

    # bf16-operand path (v5e/v6e MXU-native), f32 accumulation -> looser tolerance.
    out_bf = jax.block_until_ready(
        simple_gcn_layer(x, weight, adj2, compute_dtype=jnp.bfloat16))
    ref = _reference(x, weight, adj2)
    assert out_bf.shape == ref.shape
    assert jnp.allclose(out_bf.astype(jnp.float32), ref, atol=5e-2, rtol=5e-2)

    print("KERNEL_OK")
</pallas_src>

<mosaic_0001>
module attributes {stable_mosaic.version = 11 : i64} {
  func.func @_shared_agg_first_kernel(%arg0: i32, %arg1: memref<16x64xf32, #tpu.memory_space<vmem>>, %arg2: memref<32x64xf32, #tpu.memory_space<vmem>>, %arg3: memref<16x16xf32, #tpu.memory_space<vmem>>, %arg4: memref<16x128xf32, #tpu.memory_space<vmem>>) attributes {dimension_semantics = [#tpu.dimension_semantics<parallel>], iteration_bounds = array<i64: 1>, scalar_prefetch = 0 : i64, scratch_operands = 0 : i64, tpu.core_type = #tpu.core_type<tc>, window_params = [{pipeline_mode = #tpu.pipeline_mode<synchronous>, transform_indices = @transform_0, window_bounds = array<i64: 16, 64>}, {pipeline_mode = #tpu.pipeline_mode<synchronous>, transform_indices = @transform_1, window_bounds = array<i64: 32, 64>}, {transform_indices = @transform_2, window_bounds = array<i64: 16, 16>}, {transform_indices = @transform_3, window_bounds = array<i64: 16, 128>}]} {
    %c0 = arith.constant 0 : index
    %c0_0 = arith.constant 0 : index
    %0 = vector.load %arg3[%c0, %c0_0] : memref<16x16xf32, #tpu.memory_space<vmem>>, vector<16x16xf32>
    %c0_1 = arith.constant 0 : index
    %c0_2 = arith.constant 0 : index
    %1 = vector.load %arg1[%c0_1, %c0_2] : memref<16x64xf32, #tpu.memory_space<vmem>>, vector<16x64xf32>
    %c0_3 = arith.constant 0 : index
    %c0_4 = arith.constant 0 : index
    %2 = vector.load %arg2[%c0_3, %c0_4] : memref<32x64xf32, #tpu.memory_space<vmem>>, vector<32x64xf32>
    %cst = arith.constant dense<0.000000e+00> : vector<16x64xf32>
    %3 = tpu.matmul %0, %1, %cst {dimension_numbers = #tpu.dot_dimension_numbers<[1], [0], [0], [1], [0, 0, 1, 1], [], []>} : vector<16x16xf32>, vector<16x64xf32>, vector<16x64xf32> -> vector<16x64xf32>
    %4 = vector.extract_strided_slice %3 {offsets = [0, 0], sizes = [16, 32], strides = [1, 1]} : vector<16x64xf32> to vector<16x32xf32>
    %cst_5 = arith.constant dense<0.000000e+00> : vector<16x64xf32>
    %5 = tpu.matmul %4, %2, %cst_5 {dimension_numbers = #tpu.dot_dimension_numbers<[1], [0], [0], [1], [0, 0, 1, 1], [], []>} : vector<16x32xf32>, vector<32x64xf32>, vector<16x64xf32> -> vector<16x64xf32>
    %6 = vector.extract_strided_slice %3 {offsets = [0, 32], sizes = [16, 32], strides = [1, 1]} : vector<16x64xf32> to vector<16x32xf32>
    %cst_6 = arith.constant dense<0.000000e+00> : vector<16x64xf32>
    %7 = tpu.matmul %6, %2, %cst_6 {dimension_numbers = #tpu.dot_dimension_numbers<[1], [0], [0], [1], [0, 0, 1, 1], [], []>} : vector<16x32xf32>, vector<32x64xf32>, vector<16x64xf32> -> vector<16x64xf32>
    %8 = tpu.concatenate %5, %7 in 1 : vector<16x64xf32>, vector<16x64xf32> -> vector<16x128xf32>
    %c0_7 = arith.constant 0 : index
    %c0_8 = arith.constant 0 : index
    %9 = vector.load %arg4[%c0_7, %c0_8] : memref<16x128xf32, #tpu.memory_space<vmem>>, vector<16x128xf32>
    tpu.vector_store %arg4[%c0_7, %c0_8], %8 {strides = array<i32>} : memref<16x128xf32, #tpu.memory_space<vmem>>, vector<16x128xf32>,
    return
  }
  func.func @transform_0(%arg0: i32) -> (i32, i32) {
    %c0_i32 = arith.constant 0 : i32
    %c0_i32_0 = arith.constant 0 : i32
    %c0_i32_1 = arith.constant 0 : i32
    return %c0_i32, %c0_i32_0 : i32, i32
  }
  func.func @transform_1(%arg0: i32) -> (i32, i32) {
    %c0_i32 = arith.constant 0 : i32
    %c0_i32_0 = arith.constant 0 : i32
    %c0_i32_1 = arith.constant 0 : i32
    return %c0_i32, %c0_i32_0 : i32, i32
  }
  func.func @transform_2(%arg0: i32) -> (i32, i32) {
    %c0_i32 = arith.constant 0 : i32
    %c0_i32_0 = arith.constant 0 : i32
    return %arg0, %c0_i32 : i32, i32
  }
  func.func @transform_3(%arg0: i32) -> (i32, i32) {
    %c0_i32 = arith.constant 0 : i32
    %c0_i32_0 = arith.constant 0 : i32
    return %arg0, %c0_i32 : i32, i32
  }
}

</mosaic_0001>

<llo_original>
// kernel: tpu_custom_call.1
$region0: #{tpu_custom_call.1}
  #allocation0 [shape = 'u32[]', space=smem, size = 0x4, offset = 0x4, fixed_abs, tag = 'smem constant byte address 0x4 - core index']
  #allocation1 [shape = 'u32[144,128]{1,0:T(1,128)}', space=vmem, size = 0x12000, scoped, tag = 'internal scratch']
  %s0 = inlined_call_operand.hbm [shape: f32[16,64], index: 0, kind: input, shape index: {}]
  %s1 = inlined_call_operand.hbm [shape: f32[32,64], index: 1, kind: input, shape index: {}]
  %s2 = inlined_call_operand.hbm [shape: f32[16,16], index: 2, kind: input, shape index: {}]
  %s3 = inlined_call_operand.hbm [shape: f32[16,128], index: 3, kind: output, shape index: {}]
  %s4 = sld [smem:[#allocation0]]
  $region34: #{tpu_custom_call.1} parent=0
    _
  %s6 = ssub.s32 1, %s4
  %s7 = scalar_select 0, %s6, %s4
  $region1: #{tpu_custom_call.1} parent=0
    #allocation2 [shape = 'u8[8192]{0}', space=vmem, size = 0x2000, scoped, tag = 'input window, operand 0, single buffered']
    #allocation3 [shape = 's32[1]{0}', space=sflag, size = 0x4, scoped, tag = 'scoped memory for tpu_custom_call.1']
    #allocation4 [shape = 's32[1]{0}', space=sflag, size = 0x4, scoped, tag = 'scoped memory for tpu_custom_call.1']
    #allocation5 [shape = 'u8[16384]{0}', space=vmem, size = 0x4000, scoped, tag = 'input window, operand 1, single buffered']
    #allocation6 [shape = 's32[1]{0}', space=sflag, size = 0x4, scoped, tag = 'scoped memory for tpu_custom_call.1']
    #allocation7 [shape = 'u8[8192]{0}', space=vmem, size = 0x2000, scoped, tag = 'input window, operand 2, single buffered']
    #allocation8 [shape = 'u8[8192]{0}', space=vmem, size = 0x2000, scoped, tag = 'output window, operand 0, single buffered']
    %8 = vsyncpa [#allocation3], 0
    %9 = vsyncpa [#allocation6], 0
    %10 = vsyncpa [#allocation4], 0
    // Predicated region
    $region2: #{tpu_custom_call.1} parent=1 // pred_check
      _
    $region3: #{tpu_custom_call.1} parent=1 // pred_check_branch
      %12 = sbr.rel (0) target = $region5
    $region4: #{tpu_custom_call.1} parent=1 // pred_region
      %s14 = ssub.s32 256, 256
      %15 = vsyncadd [#allocation3], %s14
      %s16 = sshll.u32 [#allocation2], 4
      %s17 = int_to_ptr.vmem [resolvable:$true] %s16
      %22 = dma.hbm_to_vmem [thread:$0]  %s0, 256, %s17, [#allocation3], 128, 128, 8
    $region5: #{tpu_custom_call.1} parent=1 // pred_fallthru
      _
    // Predicated region
    $region6: #{tpu_custom_call.1} parent=1 // pred_check
      _
    $region7: #{tpu_custom_call.1} parent=1 // pred_check_branch
      %24 = sbr.rel (0) target = $region9
    $region8: #{tpu_custom_call.1} parent=1 // pred_region
      %s26 = ssub.s32 512, 512
      %27 = vsyncadd [#allocation6], %s26
      %s28 = sshll.u32 [#allocation5], 4
      %s29 = int_to_ptr.vmem [resolvable:$true] %s28
      %34 = dma.hbm_to_vmem [thread:$0]  %s1, 512, %s29, [#allocation6], 128, 128, 8
    $region9: #{tpu_custom_call.1} parent=1 // pred_fallthru
      _
    // Predicated region
    $region10: #{tpu_custom_call.1} parent=1 // pred_check
      _
    $region11: #{tpu_custom_call.1} parent=1 // pred_check_branch
      %36 = sbr.rel (0) target = $region13
    $region12: #{tpu_custom_call.1} parent=1 // pred_region
      %s38 = ssub.s32 256, 256
      %39 = vsyncadd [#allocation6], %s38
      %s40 = sshll.u32 [#allocation7], 4
      %s41 = int_to_ptr.vmem [resolvable:$true] %s40
      %46 = dma.hbm_to_vmem [thread:$0]  %s2, 256, %s41, [#allocation6], 128, 128, 8
    $region13: #{tpu_custom_call.1} parent=1 // pred_fallthru
      _
    // Predicated region
    $region14: #{tpu_custom_call.1} parent=1 // pred_check
      _
    $region15: #{tpu_custom_call.1} parent=1 // pred_check_branch
      %48 = sbr.rel (0) target = $region17
    $region16: #{tpu_custom_call.1} parent=1 // pred_region
      %49 = dma.done [#allocation3], 256
    $region17: #{tpu_custom_call.1} parent=1 // pred_fallthru
      _
    // Predicated region
    $region18: #{tpu_custom_call.1} parent=1 // pred_check
      _
    $region19: #{tpu_custom_call.1} parent=1 // pred_check_branch
      %51 = sbr.rel (0) target = $region21
    $region20: #{tpu_custom_call.1} parent=1 // pred_region
      %52 = dma.done [#allocation6], 512
    $region21: #{tpu_custom_call.1} parent=1 // pred_fallthru
      _
    // Predicated region
    $region22: #{tpu_custom_call.1} parent=1 // pred_check
      _
    $region23: #{tpu_custom_call.1} parent=1 // pred_check_branch
      %54 = sbr.rel (0) target = $region25
    $region24: #{tpu_custom_call.1} parent=1 // pred_region
      %55 = dma.done [#allocation6], 256
    $region25: #{tpu_custom_call.1} parent=1 // pred_fallthru
      _
    %v56 = vld [vmem:[#allocation7] sm:$0xff]
    %v57 = vld [vmem:[#allocation7 + $0x8] sm:$0xff]
    %v58 = vld [vmem:[#allocation2] sm:$0xff]
    %v59 = vld [vmem:[#allocation2 + $0x8] sm:$0xff]
    %v60 = vld [vmem:[#allocation5] sm:$0xff]
    %v61 = vld [vmem:[#allocation5 + $0x8] sm:$0xff]
    %v62 = vld [vmem:[#allocation5 + $0x10] sm:$0xff]
    %v63 = vld [vmem:[#allocation5 + $0x18] sm:$0xff]
    %vm64 = vcmask 130048
    %v66 = vsel %vm64, %v56, 0
    %v69 = vsel %vm64, %v57, 0
    %71 = vmatprep.subr.mxu0 0.0
    %72 = vmatpush1.msra.mxu0 %v58
    %73 = vmatprep.subr.mxu0 0.0
    %74 = vmatpush1.msra.mxu0 %v59
    %75 = vmatprep.subr.mxu0 0.0
    %76 = vmatpush1.msra.mxu0 0.0
    %77 = vmatprep.subr.mxu0 0.0
    %78 = vmatpush1.msra.mxu0 0.0
    %79 = vmatprep.subr.mxu0 0.0
    %80 = vmatpush1.msra.mxu0 0.0
    %81 = vmatprep.subr.mxu0 0.0
    %82 = vmatpush1.msra.mxu0 0.0
    %83 = vmatprep.subr.mxu0 0.0
    %84 = vmatpush1.msra.mxu0 0.0
    %85 = vmatprep.subr.mxu0 0.0
    %86 = vmatpush1.msra.mxu0 0.0
    %87 = vmatprep.subr.mxu0 0.0
    %88 = vmatpush1.msra.mxu0 0.0
    %89 = vmatprep.subr.mxu0 0.0
    %90 = vmatpush1.msra.mxu0 0.0
    %91 = vmatprep.subr.mxu0 0.0
    %92 = vmatpush1.msra.mxu0 0.0
    %93 = vmatprep.subr.mxu0 0.0
    %94 = vmatpush1.msra.mxu0 0.0
    %95 = vmatprep.subr.mxu0 0.0
    %96 = vmatpush1.msra.mxu0 0.0
    %97 = vmatprep.subr.mxu0 0.0
    %98 = vmatpush1.msra.mxu0 0.0
    %99 = vmatprep.subr.mxu0 0.0
    %100 = vmatpush1.msra.mxu0 0.0
    %101 = vmatprep.subr.mxu0 0.0
    %102 = vmatpush1.msra.mxu0 0.0
    %103 = vmatprep.subr.mxu0 0.0
    %104 = vmatpush1.msra.mxu0 0.0
    %105 = vmatprep.subr.mxu0 0.0
    %106 = vmatpush1.msra.mxu0 0.0
    %107 = vmatprep.subr.mxu0 0.0
    %108 = vmatpush1.msra.mxu0 0.0
    %109 = vmatprep.subr.mxu0 0.0
    %110 = vmatpush1.msra.mxu0 0.0
    %111 = vmatprep.subr.mxu0 0.0
    %112 = vmatpush1.msra.mxu0 0.0
    %113 = vmatprep.subr.mxu0 0.0
    %114 = vmatpush1.msra.mxu0 0.0
    %115 = vmatprep.subr.mxu0 0.0
    %116 = vmatpush1.msra.mxu0 0.0
    %117 = vmatprep.subr.mxu0 0.0
    %118 = vmatpush1.msra.mxu0 0.0
    %119 = vmatprep.subr.mxu0 0.0
    %120 = vmatpush1.msra.mxu0 0.0
    %121 = vmatprep.subr.mxu0 0.0
    %122 = vmatpush1.msra.mxu0 0.0
    %123 = vmatprep.subr.mxu0 0.0
    %124 = vmatpush1.msra.mxu0 0.0
    %125 = vmatprep.subr.mxu0 0.0
    %126 = vmatpush1.msra.mxu0 0.0
    %127 = vmatprep.subr.mxu0 0.0
    %128 = vmatpush1.msra.mxu0 0.0
    %129 = vmatprep.subr.mxu0 0.0
    %130 = vmatpush1.msra.mxu0 0.0
    %131 = vmatprep.subr.mxu0 0.0
    %132 = vmatpush1.msra.mxu0 0.0
    %133 = vmatprep.subr.mxu0 0.0
    %134 = vmatpush1.msra.mxu0 0.0
    %135 = vmatprep.mubr.f32.mxu0 0.0
    %136 = vmatmul.mubr.f32.gmra.mrb[0].mxu0 %v66
    %v137 = vpop.f32.mrb[0].mxu0
    %v138 = vadd.f32 0.0, %v137
    %v139 = vpop.f32.mrb[0].mxu0
    %140 = vmatprep.mubr.f32.mxu0 0.0
    %141 = vmatmul.mubr.f32.gmra.mrb[0].mxu0 %v69
    %v142 = vpop.f32.mrb[0].mxu0
    %v143 = vadd.f32 0.0, %v142
    %v144 = vpop.f32.mrb[0].mxu0
    %145 = vdwg.mxu0
    %vm146 = vcmask 261120
    %v148 = vsel %vm146, %v138, 0
    %v151 = vsel %vm146, %v143, 0
    %153 = vmatprep.subr.mxu0 0.0
    %154 = vmatpush1.msra.mxu0 %v60
    %155 = vmatprep.subr.mxu0 0.0
    %156 = vmatpush1.msra.mxu0 %v61
    %157 = vmatprep.subr.mxu0 0.0
    %158 = vmatpush1.msra.mxu0 %v62
    %159 = vmatprep.subr.mxu0 0.0
    %160 = vmatpush1.msra.mxu0 %v63
    %161 = vmatprep.subr.mxu0 0.0
    %162 = vmatpush1.msra.mxu0 0.0
    %163 = vmatprep.subr.mxu0 0.0
    %164 = vmatpush1.msra.mxu0 0.0
    %165 = vmatprep.subr.mxu0 0.0
    %166 = vmatpush1.msra.mxu0 0.0
    %167 = vmatprep.subr.mxu0 0.0
    %168 = vmatpush1.msra.mxu0 0.0
    %169 = vmatprep.subr.mxu0 0.0
    %170 = vmatpush1.msra.mxu0 0.0
    %171 = vmatprep.subr.mxu0 0.0
    %172 = vmatpush1.msra.mxu0 0.0
    %173 = vmatprep.subr.mxu0 0.0
    %174 = vmatpush1.msra.mxu0 0.0
    %175 = vmatprep.subr.mxu0 0.0
    %176 = vmatpush1.msra.mxu0 0.0
    %177 = vmatprep.subr.mxu0 0.0
    %178 = vmatpush1.msra.mxu0 0.0
    %179 = vmatprep.subr.mxu0 0.0
    %180 = vmatpush1.msra.mxu0 0.0
    %181 = vmatprep.subr.mxu0 0.0
    %182 = vmatpush1.msra.mxu0 0.0
    %183 = vmatprep.subr.mxu0 0.0
    %184 = vmatpush1.msra.mxu0 0.0
    %185 = vmatprep.subr.mxu0 0.0
    %186 = vmatpush1.msra.mxu0 0.0
    %187 = vmatprep.subr.mxu0 0.0
    %188 = vmatpush1.msra.mxu0 0.0
    %189 = vmatprep.subr.mxu0 0.0
    %190 = vmatpush1.msra.mxu0 0.0
    %191 = vmatprep.subr.mxu0 0.0
    %192 = vmatpush1.msra.mxu0 0.0
    %193 = vmatprep.subr.mxu0 0.0
    %194 = vmatpush1.msra.mxu0 0.0
    %195 = vmatprep.subr.mxu0 0.0
    %196 = vmatpush1.msra.mxu0 0.0
    %197 = vmatprep.subr.mxu0 0.0
    %198 = vmatpush1.msra.mxu0 0.0
    %199 = vmatprep.subr.mxu0 0.0
    %200 = vmatpush1.msra.mxu0 0.0
    %201 = vmatprep.subr.mxu0 0.0
    %202 = vmatpush1.msra.mxu0 0.0
    %203 = vmatprep.subr.mxu0 0.0
    %204 = vmatpush1.msra.mxu0 0.0
    %205 = vmatprep.subr.mxu0 0.0
    %206 = vmatpush1.msra.mxu0 0.0
    %207 = vmatprep.subr.mxu0 0.0
    %208 = vmatpush1.msra.mxu0 0.0
    %209 = vmatprep.subr.mxu0 0.0
    %210 = vmatpush1.msra.mxu0 0.0
    %211 = vmatprep.subr.mxu0 0.0
    %212 = vmatpush1.msra.mxu0 0.0
    %213 = vmatprep.subr.mxu0 0.0
    %214 = vmatpush1.msra.mxu0 0.0
    %215 = vmatprep.subr.mxu0 0.0
    %216 = vmatpush1.msra.mxu0 0.0
    %217 = vmatprep.mubr.f32.mxu0 0.0
    %218 = vmatmul.mubr.f32.gmra.mrb[0].mxu0 %v148
    %v219 = vpop.f32.mrb[0].mxu0
    %v220 = vadd.f32 0.0, %v219
    %v221 = vpop.f32.mrb[0].mxu0
    %222 = vmatprep.mubr.f32.mxu0 0.0
    %223 = vmatmul.mubr.f32.gmra.mrb[0].mxu0 %v151
    %v224 = vpop.f32.mrb[0].mxu0
    %v225 = vadd.f32 0.0, %v224
    %v226 = vpop.f32.mrb[0].mxu0
    %227 = vdwg.mxu0
    %228 = vrot.lane.b32.xlu0 %v138, 96
    %v229 = vpop.permute.xlu0 %228
    %230 = vrot.lane.b32.xlu0 %v143, 96
    %v231 = vpop.permute.xlu0 %230
    %v232 = vsel %vm146, %v229, 0
    %v234 = vsel %vm146, %v231, 0
    %236 = vmatprep.subr.mxu0 0.0
    %237 = vmatpush1.msra.mxu0 %v60
    %238 = vmatprep.subr.mxu0 0.0
    %239 = vmatpush1.msra.mxu0 %v61
    %240 = vmatprep.subr.mxu0 0.0
    %241 = vmatpush1.msra.mxu0 %v62
    %242 = vmatprep.subr.mxu0 0.0
    %243 = vmatpush1.msra.mxu0 %v63
    %244 = vmatprep.subr.mxu0 0.0
    %245 = vmatpush1.msra.mxu0 0.0
    %246 = vmatprep.subr.mxu0 0.0
    %247 = vmatpush1.msra.mxu0 0.0
    %248 = vmatprep.subr.mxu0 0.0
    %249 = vmatpush1.msra.mxu0 0.0
    %250 = vmatprep.subr.mxu0 0.0
    %251 = vmatpush1.msra.mxu0 0.0
    %252 = vmatprep.subr.mxu0 0.0
    %253 = vmatpush1.msra.mxu0 0.0
    %254 = vmatprep.subr.mxu0 0.0
    %255 = vmatpush1.msra.mxu0 0.0
    %256 = vmatprep.subr.mxu0 0.0
    %257 = vmatpush1.msra.mxu0 0.0
    %258 = vmatprep.subr.mxu0 0.0
    %259 = vmatpush1.msra.mxu0 0.0
    %260 = vmatprep.subr.mxu0 0.0
    %261 = vmatpush1.msra.mxu0 0.0
    %262 = vmatprep.subr.mxu0 0.0
    %263 = vmatpush1.msra.mxu0 0.0
    %264 = vmatprep.subr.mxu0 0.0
    %265 = vmatpush1.msra.mxu0 0.0
    %266 = vmatprep.subr.mxu0 0.0
    %267 = vmatpush1.msra.mxu0 0.0
    %268 = vmatprep.subr.mxu0 0.0
    %269 = vmatpush1.msra.mxu0 0.0
    %270 = vmatprep.subr.mxu0 0.0
    %271 = vmatpush1.msra.mxu0 0.0
    %272 = vmatprep.subr.mxu0 0.0
    %273 = vmatpush1.msra.mxu0 0.0
    %274 = vmatprep.subr.mxu0 0.0
    %275 = vmatpush1.msra.mxu0 0.0
    %276 = vmatprep.subr.mxu0 0.0
    %277 = vmatpush1.msra.mxu0 0.0
    %278 = vmatprep.subr.mxu0 0.0
    %279 = vmatpush1.msra.mxu0 0.0
    %280 = vmatprep.subr.mxu0 0.0
    %281 = vmatpush1.msra.mxu0 0.0
    %282 = vmatprep.subr.mxu0 0.0
    %283 = vmatpush1.msra.mxu0 0.0
    %284 = vmatprep.subr.mxu0 0.0
    %285 = vmatpush1.msra.mxu0 0.0
    %286 = vmatprep.subr.mxu0 0.0
    %287 = vmatpush1.msra.mxu0 0.0
    %288 = vmatprep.subr.mxu0 0.0
    %289 = vmatpush1.msra.mxu0 0.0
    %290 = vmatprep.subr.mxu0 0.0
    %291 = vmatpush1.msra.mxu0 0.0
    %292 = vmatprep.subr.mxu0 0.0
    %293 = vmatpush1.msra.mxu0 0.0
    %294 = vmatprep.subr.mxu0 0.0
    %295 = vmatpush1.msra.mxu0 0.0
    %296 = vmatprep.subr.mxu0 0.0
    %297 = vmatpush1.msra.mxu0 0.0
    %298 = vmatprep.subr.mxu0 0.0
    %299 = vmatpush1.msra.mxu0 0.0
    %300 = vmatprep.mubr.f32.mxu0 0.0
    %301 = vmatmul.mubr.f32.gmra.mrb[0].mxu0 %v232
    %v302 = vpop.f32.mrb[0].mxu0
    %v303 = vadd.f32 0.0, %v302
    %v304 = vpop.f32.mrb[0].mxu0
    %305 = vmatprep.mubr.f32.mxu0 0.0
    %306 = vmatmul.mubr.f32.gmra.mrb[0].mxu0 %v234
    %v307 = vpop.f32.mrb[0].mxu0
    %v308 = vadd.f32 0.0, %v307
    %v309 = vpop.f32.mrb[0].mxu0
    %310 = vdwg.mxu0
    %313 = vrot.lane.b32.xlu0 %v303, 64
    %v314 = vpop.permute.xlu0 %313
    %315 = vrot.lane.b32.xlu0 %v308, 64
    %v316 = vpop.permute.xlu0 %315
    %vm319 = vcmask 523264
    %v320 = vsel %vm319, %v220, %v314
    %v321 = vsel %vm319, %v225, %v316
    %322 = vst [vmem:[#allocation8] sm:$0xff] %v320
    %323 = vst [vmem:[#allocation8 + $0x8] sm:$0xff] %v321
    // Predicated region
    $region26: #{tpu_custom_call.1} parent=1 // pred_check
      _
    $region27: #{tpu_custom_call.1} parent=1 // pred_check_branch
      %325 = sbr.rel (0) target = $region29
    $region28: #{tpu_custom_call.1} parent=1 // pred_region
      %s327 = ssub.s32 256, 256
      %328 = vsyncadd [#allocation4], %s327
      %s329 = sshll.u32 [#allocation8], 4
      %s330 = int_to_ptr.vmem [resolvable:$true] %s329
      %335 = dma.vmem_to_hbm [thread:$0]  %s330, 256, %s3, [#allocation4], 128, 128, 8
    $region29: #{tpu_custom_call.1} parent=1 // pred_fallthru
      _
    // Predicated region
    $region30: #{tpu_custom_call.1} parent=1 // pred_check
      _
    $region31: #{tpu_custom_call.1} parent=1 // pred_check_branch
      %337 = sbr.rel (0) target = $region33
    $region32: #{tpu_custom_call.1} parent=1 // pred_region
      %338 = dma.done [#allocation4], 256
    $region33: #{tpu_custom_call.1} parent=1 // pred_fallthru
      _
    %339 = vsyncpa [#allocation3], 1
    %340 = vsyncpa [#allocation6], 1
    %341 = vsyncpa [#allocation4], 1

</llo_original>
